<compile_context>
chip_gen: v7x
topology: tpu7x:2x2x1
jax: 0.10.0
libtpu: 0.0.40
codegen_flags: <defaults>
</compile_context>

<pallas_src>
import functools
import numpy as np

import jax
import jax.numpy as jnp
from jax.experimental import pallas as pl
from jax.experimental.pallas import tpu as pltpu


def _round_up(x, m):
    return ((x + m - 1) // m) * m


_VMEM_LIMIT = 32 * 1024 * 1024
_CIN_MIN = 16   # pad tiny channel counts (first conv has Cin=1) up to this


# ----------------------------------------------------------------------------
# Fused matmul kernel (log-mel / fc1 / fc_transfer epilogues)
# ----------------------------------------------------------------------------
def _fused_matmul_kernel(*refs, epilogue, amin):
    if epilogue == "logmel":
        x_ref, w_ref, s_ref, b_ref, o_ref, acc_ref = refs
    else:
        x_ref, w_ref, b_ref, o_ref, acc_ref = refs

    k = pl.program_id(2)

    @pl.when(k == 0)
    def _():
        acc_ref[...] = jnp.zeros_like(acc_ref)

    acc_ref[...] += jnp.dot(x_ref[...], w_ref[...],
                            preferred_element_type=jnp.float32)

    @pl.when(k == pl.num_programs(2) - 1)
    def _():
        acc = acc_ref[...]
        if epilogue == "logmel":
            # power_to_db (ref=1.0, top_db=None) followed by folded bn0 affine.
            y = (10.0 / np.log(10.0)) * jnp.log(jnp.maximum(acc, amin))
            y = y * s_ref[...] + b_ref[...]
        elif epilogue == "bias_relu":
            y = jnp.maximum(acc + b_ref[...], 0.0)
        elif epilogue == "bias":
            y = acc + b_ref[...]
        else:
            y = acc
        o_ref[...] = y.astype(o_ref.dtype)


def fused_matmul(x, w, bias, scale=None, epilogue="bias", amin=1e-10,
                 out_dtype=jnp.float32):
    """epilogue(x @ w [, scale, bias]).  x:(M,K)  w:(K,N)  bias/scale:(N,)."""
    M, K = x.shape
    _, N = w.shape
    tm = min(512, _round_up(M, 16))            # bf16 sublane granularity
    tn = min(512, _round_up(N, 128))
    Kp = _round_up(K, 128)                     # no over-padding of K
    tk = 512 if (Kp > 512 and Kp % 512 == 0) else Kp
    Mp, Np = _round_up(M, tm), _round_up(N, tn)

    xp = jnp.pad(x.astype(jnp.bfloat16), ((0, Mp - M), (0, Kp - K)))
    wp = jnp.pad(w.astype(jnp.bfloat16), ((0, Kp - K), (0, Np - N)))
    bp = jnp.pad(bias.reshape(1, -1).astype(jnp.float32), ((0, 0), (0, Np - N)))

    operands = [xp, wp]
    in_specs = [pl.BlockSpec((tm, tk), lambda i, j, k: (i, k)),
                pl.BlockSpec((tk, tn), lambda i, j, k: (k, j))]
    if epilogue == "logmel":
        sp = jnp.pad(scale.reshape(1, -1).astype(jnp.float32),
                     ((0, 0), (0, Np - N)))
        operands.append(sp)
        in_specs.append(pl.BlockSpec((1, tn), lambda i, j, k: (0, j)))
    operands.append(bp)
    in_specs.append(pl.BlockSpec((1, tn), lambda i, j, k: (0, j)))

    out = pl.pallas_call(
        functools.partial(_fused_matmul_kernel, epilogue=epilogue, amin=amin),
        out_shape=jax.ShapeDtypeStruct((Mp, Np), out_dtype),
        grid_spec=pltpu.PrefetchScalarGridSpec(
            num_scalar_prefetch=0,
            grid=(Mp // tm, Np // tn, Kp // tk),
            in_specs=in_specs,
            out_specs=pl.BlockSpec((tm, tn), lambda i, j, k: (i, j)),
            scratch_shapes=[pltpu.VMEM((tm, tn), jnp.float32)],
        ),
        compiler_params=pltpu.CompilerParams(
            dimension_semantics=("parallel", "parallel", "arbitrary"),
            vmem_limit_bytes=_VMEM_LIMIT),
    )(*operands)
    return out[:M, :N]


# ----------------------------------------------------------------------------
# STFT power spectrum kernel
# ----------------------------------------------------------------------------
def _spec_power_kernel(x_ref, wr_ref, wi_ref, o_ref, ar_ref, ai_ref):
    k = pl.program_id(2)

    @pl.when(k == 0)
    def _():
        ar_ref[...] = jnp.zeros_like(ar_ref)
        ai_ref[...] = jnp.zeros_like(ai_ref)

    ar_ref[...] += jnp.dot(x_ref[...], wr_ref[...],
                           preferred_element_type=jnp.float32)
    ai_ref[...] += jnp.dot(x_ref[...], wi_ref[...],
                           preferred_element_type=jnp.float32)

    @pl.when(k == pl.num_programs(2) - 1)
    def _():
        o_ref[...] = ar_ref[...] ** 2 + ai_ref[...] ** 2


def spec_power(frames, wr, wi):
    """Power spectrogram: (frames @ Wr)^2 + (frames @ Wi)^2."""
    M, K = frames.shape
    _, N = wr.shape
    tm = min(512, _round_up(M, 16))
    tn = min(512, _round_up(N, 128))
    Kp = _round_up(K, 128)
    tk = Kp
    Mp, Np = _round_up(M, tm), _round_up(N, tn)

    xp = jnp.pad(frames.astype(jnp.bfloat16), ((0, Mp - M), (0, Kp - K)))
    wrp = jnp.pad(wr.astype(jnp.bfloat16), ((0, Kp - K), (0, Np - N)))
    wip = jnp.pad(wi.astype(jnp.bfloat16), ((0, Kp - K), (0, Np - N)))

    out = pl.pallas_call(
        _spec_power_kernel,
        out_shape=jax.ShapeDtypeStruct((Mp, Np), jnp.float32),
        grid_spec=pltpu.PrefetchScalarGridSpec(
            num_scalar_prefetch=0,
            grid=(Mp // tm, Np // tn, Kp // tk),
            in_specs=[
                pl.BlockSpec((tm, tk), lambda i, j, k: (i, k)),
                pl.BlockSpec((tk, tn), lambda i, j, k: (k, j)),
                pl.BlockSpec((tk, tn), lambda i, j, k: (k, j)),
            ],
            out_specs=pl.BlockSpec((tm, tn), lambda i, j, k: (i, j)),
            scratch_shapes=[pltpu.VMEM((tm, tn), jnp.float32),
                            pltpu.VMEM((tm, tn), jnp.float32)],
        ),
        compiler_params=pltpu.CompilerParams(
            dimension_semantics=("parallel", "parallel", "arbitrary"),
            vmem_limit_bytes=_VMEM_LIMIT),
    )(xp, wrp, wip)
    return out[:M, :N]


# ----------------------------------------------------------------------------
# 3x3 conv + folded BN + ReLU kernel (no im2col in HBM)
# ----------------------------------------------------------------------------
def _conv3x3_kernel(x_ref, w_ref, s_ref, b_ref, o_ref, acc_ref, *, Wp, Mout):
    # x_ref : (1, Mpad, tcin)  -- zero-padded image flattened row-major over
    #                             (Hp, Wp); halo rows at the end are zero.
    # w_ref : (9, tcin, tcout) -- 3x3 taps in (kh, kw) row-major order.
    k = pl.program_id(2)

    @pl.when(k == 0)
    def _():
        acc_ref[...] = jnp.zeros_like(acc_ref)

    for kh in range(3):
        for kw in range(3):
            off = kh * Wp + kw                       # static offset
            patch = x_ref[0, pl.ds(off, Mout), :]    # (Mout, tcin)
            acc_ref[...] += jnp.dot(patch, w_ref[kh * 3 + kw],
                                    preferred_element_type=jnp.float32)

    @pl.when(k == pl.num_programs(2) - 1)
    def _():
        y = acc_ref[...] * s_ref[...] + b_ref[...]
        o_ref[0] = jnp.maximum(y, 0.0).astype(o_ref.dtype)


def conv3x3_bn_relu(x, w, scale, bias):
    """3x3 same-pad conv (no bias) + folded BatchNorm + ReLU.  Returns bf16.

    x: (B, H, W, Cin), w: (3, 3, Cin, Cout), scale/bias: (Cout,)
    """
    B, H, W, Cin = x.shape
    Cout = w.shape[-1]
    Hp, Wp = H + 2, W + 2
    Mvalid = Hp * Wp
    Mout = _round_up(Mvalid, 16)
    Mpad = _round_up(Mout + 2 * Wp + 2, 16)       # room for the 9-tap halo
    Cin_p = Cin if Cin >= _CIN_MIN else _CIN_MIN

    # Zero-pad spatially (same conv) + channel-pad tiny Cin, then flatten.
    xp = jnp.pad(x.astype(jnp.bfloat16),
                 ((0, 0), (1, 1), (1, 1), (0, Cin_p - Cin)))
    xf = xp.reshape(B, Mvalid, Cin_p)
    xf = jnp.pad(xf, ((0, 0), (0, Mpad - Mvalid), (0, 0)))

    wf = jnp.pad(w.astype(jnp.bfloat16).reshape(9, Cin, Cout),
                 ((0, 0), (0, Cin_p - Cin), (0, 0)))
    s2 = scale.reshape(1, -1).astype(jnp.float32)
    b2 = bias.reshape(1, -1).astype(jnp.float32)

    tcin = min(512, Cin_p)
    tcout = min(512, Cout)
    grid = (B, Cout // tcout, Cin_p // tcin)

    out = pl.pallas_call(
        functools.partial(_conv3x3_kernel, Wp=Wp, Mout=Mout),
        out_shape=jax.ShapeDtypeStruct((B, Mout, Cout), jnp.bfloat16),
        grid_spec=pltpu.PrefetchScalarGridSpec(
            num_scalar_prefetch=0,
            grid=grid,
            in_specs=[
                pl.BlockSpec((1, Mpad, tcin), lambda b, j, k: (b, 0, k)),
                pl.BlockSpec((9, tcin, tcout), lambda b, j, k: (0, k, j)),
                pl.BlockSpec((1, tcout), lambda b, j, k: (0, j)),
                pl.BlockSpec((1, tcout), lambda b, j, k: (0, j)),
            ],
            out_specs=pl.BlockSpec((1, Mout, tcout), lambda b, j, k: (b, 0, j)),
            scratch_shapes=[pltpu.VMEM((Mout, tcout), jnp.float32)],
        ),
        compiler_params=pltpu.CompilerParams(
            dimension_semantics=("parallel", "parallel", "arbitrary"),
            vmem_limit_bytes=_VMEM_LIMIT),
    )(xf, wf, s2, b2)

    # Valid outputs live at rows i*Wp + j for i<H, j<W of the (Hp, Wp) grid.
    y = out[:, :Mvalid, :].reshape(B, Hp, Wp, Cout)[:, :H, :W, :]
    return y


def avg_pool_2x2(x):
    B, H, W, C = x.shape
    H2, W2 = (H // 2) * 2, (W // 2) * 2
    x = x[:, :H2, :W2, :].astype(jnp.float32)
    x = x.reshape(B, H2 // 2, 2, W2 // 2, 2, C)
    return jnp.mean(x, axis=(2, 4)).astype(jnp.bfloat16)


# ----------------------------------------------------------------------------
# Parameters (deterministic, synthetic)
# ----------------------------------------------------------------------------
def make_params(sample_rate, window_size, hop_size, mel_bins, fmin, fmax,
                classes_num, seed=42):
    assert mel_bins == 64, "bn0 in Cnn14 is BatchNorm2d(64) -> mel_bins must be 64"
    key = jax.random.PRNGKey(seed)
    n_fft = window_size
    freq_bins = n_fft // 2 + 1

    # --- Spectrogram buffers (torchlibrosa Spectrogram equivalent) ---
    n = np.arange(n_fft)
    win = 0.5 - 0.5 * np.cos(2.0 * np.pi * n / n_fft)      # periodic hann
    k = np.arange(freq_bins)
    ang = 2.0 * np.pi * np.outer(n, k) / n_fft              # (n_fft, freq)
    dft_real = (win[:, None] * np.cos(ang)).astype(np.float32)
    dft_imag = (-win[:, None] * np.sin(ang)).astype(np.float32)

    # --- Mel filterbank buffer ---
    # TODO(synk): librosa Slaney-normalized mel filterbank not reproduced exactly;
    #             this is a synthetic triangular (HTK-mel) buffer of identical shape.
    def hz2mel(f): return 2595.0 * np.log10(1.0 + f / 700.0)
    def mel2hz(m): return 700.0 * (10.0 ** (m / 2595.0) - 1.0)
    fmax_ = fmax if fmax is not None else sample_rate / 2.0
    fpts = mel2hz(np.linspace(hz2mel(fmin), hz2mel(fmax_), mel_bins + 2))
    fftfreqs = np.linspace(0.0, sample_rate / 2.0, freq_bins)
    melW = np.zeros((freq_bins, mel_bins), np.float32)
    for m in range(mel_bins):
        lo, ce, hi = fpts[m], fpts[m + 1], fpts[m + 2]
        up = (fftfreqs - lo) / max(ce - lo, 1e-6)
        dn = (hi - fftfreqs) / max(hi - ce, 1e-6)
        melW[:, m] = np.maximum(0.0, np.minimum(up, dn))

    # --- BatchNorm fold helpers ---
    def bn_fold(k_, c):
        k1, k2, k3, k4 = jax.random.split(k_, 4)
        gamma = 1.0 + 0.1 * jax.random.normal(k1, (c,), jnp.float32)
        beta = 0.1 * jax.random.normal(k2, (c,), jnp.float32)
        mean = 0.1 * jax.random.normal(k3, (c,), jnp.float32)
        var = 1.0 + 0.1 * jnp.abs(jax.random.normal(k4, (c,), jnp.float32))
        scale = gamma / jnp.sqrt(var + 1e-5)
        shift = beta - mean * scale
        return scale, shift

    def conv_w(k_, cin, cout):
        std = np.sqrt(2.0 / (9.0 * cin))
        return std * jax.random.normal(k_, (3, 3, cin, cout), jnp.float32)

    def linear_w(k_, fin, fout):
        std = np.sqrt(2.0 / (fin + fout))
        return std * jax.random.normal(k_, (fin, fout), jnp.float32)

    bn0_scale, bn0_shift = bn_fold(jax.random.fold_in(key, 0), mel_bins)

    channels = [(1, 64), (64, 128), (128, 256), (256, 512),
                (512, 1024), (1024, 2048)]
    conv_blocks = []
    for i, (cin, cout) in enumerate(channels):
        kb = jax.random.fold_in(key, 100 + i)
        k1, k2, k3, k4 = jax.random.split(kb, 4)
        s1, b1 = bn_fold(k3, cout)
        s2, b2 = bn_fold(k4, cout)
        conv_blocks.append(dict(
            w1=conv_w(k1, cin, cout), s1=s1, b1=b1,
            w2=conv_w(k2, cout, cout), s2=s2, b2=b2,
            pool=(i < 5)))   # conv_block6 uses pool_size=(1,1) -> identity

    kfc = jax.random.fold_in(key, 1000)
    kf1, kf2, kf3, kf4 = jax.random.split(kfc, 4)
    params = dict(
        n_fft=n_fft, hop_size=hop_size, mel_bins=mel_bins,
        classes_num=classes_num,
        dft_real=jnp.asarray(dft_real), dft_imag=jnp.asarray(dft_imag),
        melW=jnp.asarray(melW),
        bn0_scale=bn0_scale, bn0_shift=bn0_shift,
        conv_blocks=conv_blocks,
        fc1_w=linear_w(kf1, 2048, 2048),
        fc1_b=0.01 * jax.random.normal(kf2, (2048,), jnp.float32),
        # fc_transfer head of Transfer_Cnn14 (the base's fc_audioset is not
        # needed: Transfer_Cnn14.forward only uses the embedding).
        fc_transfer_w=linear_w(kf3, 2048, classes_num),
        fc_transfer_b=0.01 * jax.random.normal(kf4, (classes_num,), jnp.float32),
    )
    return params


# ----------------------------------------------------------------------------
# Forward pass of Transfer_Cnn14: fc_transfer(Cnn14 embedding)
# ----------------------------------------------------------------------------
def transfer_cnn14_forward(params, waveform):
    """waveform: (batch, data_length) float32 -> (batch, classes_num)."""
    n_fft, hop = params["n_fft"], params["hop_size"]
    B, _ = waveform.shape

    # STFT framing (center=True, reflect padding) — glue.
    pad = n_fft // 2
    xpad = jnp.pad(waveform, ((0, 0), (pad, pad)), mode="reflect")
    n_frames = 1 + (xpad.shape[1] - n_fft) // hop
    idx = np.arange(n_frames)[:, None] * hop + np.arange(n_fft)[None, :]
    frames = xpad[:, idx].reshape(B * n_frames, n_fft)

    # Power spectrogram (Pallas, bf16 MXU, f32 accumulate).
    power = spec_power(frames, params["dft_real"], params["dft_imag"])
    # Log-mel + power_to_db + folded bn0 affine (Pallas), output bf16.
    x = fused_matmul(power, params["melW"], bias=params["bn0_shift"],
                     scale=params["bn0_scale"], epilogue="logmel",
                     amin=1e-10, out_dtype=jnp.bfloat16)

    x = x.reshape(B, n_frames, params["mel_bins"], 1)  # NHWC: H=time, W=mel
    # spec_augmenter / mixup / dropout: eval mode -> identity.

    for blk in params["conv_blocks"]:
        x = conv3x3_bn_relu(x, blk["w1"], blk["s1"], blk["b1"])
        x = conv3x3_bn_relu(x, blk["w2"], blk["s2"], blk["b2"])
        if blk["pool"]:
            x = avg_pool_2x2(x)

    # torch.mean(x, dim=3): mean over the mel/freq axis.
    x = jnp.mean(x.astype(jnp.float32), axis=2)        # (B, T', 2048)
    # (x1,_) = max over time; x2 = mean over time; x = x1 + x2.
    x = jnp.max(x, axis=1) + jnp.mean(x, axis=1)       # (B, 2048)

    # fc1 + ReLU -> embedding (Pallas, bias-only epilogue: no ones-scale mul).
    emb = fused_matmul(x, params["fc1_w"], bias=params["fc1_b"],
                       epilogue="bias_relu", out_dtype=jnp.bfloat16)
    # fc_transfer (no activation in Transfer_Cnn14.forward).
    out = fused_matmul(emb, params["fc_transfer_w"],
                       bias=params["fc_transfer_b"],
                       epilogue="bias", out_dtype=jnp.float32)
    return out


# ----------------------------------------------------------------------------
if __name__ == "__main__":
    sample_rate = 16000
    window_size = 64          # small n_fft for a small example
    hop_size = 32
    mel_bins = 64             # fixed by bn0 = BatchNorm2d(64)
    fmin, fmax = 50, 8000
    classes_num = 10

    params = make_params(sample_rate, window_size, hop_size, mel_bins,
                         fmin, fmax, classes_num, seed=42)

    key = jax.random.PRNGKey(0)
    batch, data_length = 2, 2048
    waveform = jax.random.normal(key, (batch, data_length), jnp.float32)

    out = transfer_cnn14_forward(params, waveform)
    out = jax.block_until_ready(out)

    assert out.shape == (batch, classes_num), out.shape
    assert out.dtype == jnp.float32
    assert bool(jnp.all(jnp.isfinite(out)))
    print("KERNEL_OK")
</pallas_src>

<mosaic_0001>
module attributes {stable_mosaic.version = 11 : i64} {
  func.func @_spec_power_kernel(%arg0: i32, %arg1: i32, %arg2: i32, %arg3: memref<144x128xbf16, #tpu.memory_space<vmem>>, %arg4: memref<128x128xbf16, #tpu.memory_space<vmem>>, %arg5: memref<128x128xbf16, #tpu.memory_space<vmem>>, %arg6: memref<144x128xf32, #tpu.memory_space<vmem>>, %arg7: memref<144x128xf32, #tpu.memory_space<vmem>>, %arg8: memref<144x128xf32, #tpu.memory_space<vmem>>) attributes {dimension_semantics = [#tpu.dimension_semantics<parallel>, #tpu.dimension_semantics<parallel>, #tpu.dimension_semantics<arbitrary>], iteration_bounds = array<i64: 1, 1, 1>, scalar_prefetch = 0 : i64, scratch_operands = 2 : i64, tpu.core_type = #tpu.core_type<tc>, window_params = [{transform_indices = @transform_0, window_bounds = array<i64: 144, 128>}, {transform_indices = @transform_1, window_bounds = array<i64: 128, 128>}, {transform_indices = @transform_2, window_bounds = array<i64: 128, 128>}, {transform_indices = @transform_3, window_bounds = array<i64: 144, 128>}]} {
    %c0_i32 = arith.constant 0 : i32
    %0 = arith.cmpi eq, %arg2, %c0_i32 : i32
    %1 = arith.extui %0 : i1 to i32
    %c0_i32_0 = arith.constant 0 : i32
    %2 = arith.cmpi ne, %1, %c0_i32_0 : i32
    scf.if %2 {
      %cst_19 = arith.constant 0.000000e+00 : f32
      %18 = vector.broadcast %cst_19 : f32 to vector<144x128xf32>
      %c0_20 = arith.constant 0 : index
      %c0_21 = arith.constant 0 : index
      %19 = vector.load %arg7[%c0_20, %c0_21] : memref<144x128xf32, #tpu.memory_space<vmem>>, vector<144x128xf32>
      tpu.vector_store %arg7[%c0_20, %c0_21], %18 {strides = array<i32>} : memref<144x128xf32, #tpu.memory_space<vmem>>, vector<144x128xf32>,
      %cst_22 = arith.constant 0.000000e+00 : f32
      %20 = vector.broadcast %cst_22 : f32 to vector<144x128xf32>
      %c0_23 = arith.constant 0 : index
      %c0_24 = arith.constant 0 : index
      %21 = vector.load %arg8[%c0_23, %c0_24] : memref<144x128xf32, #tpu.memory_space<vmem>>, vector<144x128xf32>
      tpu.vector_store %arg8[%c0_23, %c0_24], %20 {strides = array<i32>} : memref<144x128xf32, #tpu.memory_space<vmem>>, vector<144x128xf32>,
    } else {
    }
    %c0 = arith.constant 0 : index
    %c0_1 = arith.constant 0 : index
    %3 = vector.load %arg7[%c0, %c0_1] : memref<144x128xf32, #tpu.memory_space<vmem>>, vector<144x128xf32>
    %c0_2 = arith.constant 0 : index
    %c0_3 = arith.constant 0 : index
    %4 = vector.load %arg3[%c0_2, %c0_3] : memref<144x128xbf16, #tpu.memory_space<vmem>>, vector<144x128xbf16>
    %c0_4 = arith.constant 0 : index
    %c0_5 = arith.constant 0 : index
    %5 = vector.load %arg4[%c0_4, %c0_5] : memref<128x128xbf16, #tpu.memory_space<vmem>>, vector<128x128xbf16>
    %cst = arith.constant dense<0.000000e+00> : vector<144x128xf32>
    %6 = tpu.matmul %4, %5, %cst {dimension_numbers = #tpu.dot_dimension_numbers<[1], [0], [0], [1], [0, 0, 1, 1], [], []>} : vector<144x128xbf16>, vector<128x128xbf16>, vector<144x128xf32> -> vector<144x128xf32>
    %7 = arith.addf %3, %6 : vector<144x128xf32>
    %c0_6 = arith.constant 0 : index
    %c0_7 = arith.constant 0 : index
    %8 = vector.load %arg7[%c0_6, %c0_7] : memref<144x128xf32, #tpu.memory_space<vmem>>, vector<144x128xf32>
    tpu.vector_store %arg7[%c0_6, %c0_7], %7 {strides = array<i32>} : memref<144x128xf32, #tpu.memory_space<vmem>>, vector<144x128xf32>,
    %c0_8 = arith.constant 0 : index
    %c0_9 = arith.constant 0 : index
    %9 = vector.load %arg8[%c0_8, %c0_9] : memref<144x128xf32, #tpu.memory_space<vmem>>, vector<144x128xf32>
    %c0_10 = arith.constant 0 : index
    %c0_11 = arith.constant 0 : index
    %10 = vector.load %arg3[%c0_10, %c0_11] : memref<144x128xbf16, #tpu.memory_space<vmem>>, vector<144x128xbf16>
    %c0_12 = arith.constant 0 : index
    %c0_13 = arith.constant 0 : index
    %11 = vector.load %arg5[%c0_12, %c0_13] : memref<128x128xbf16, #tpu.memory_space<vmem>>, vector<128x128xbf16>
    %cst_14 = arith.constant dense<0.000000e+00> : vector<144x128xf32>
    %12 = tpu.matmul %10, %11, %cst_14 {dimension_numbers = #tpu.dot_dimension_numbers<[1], [0], [0], [1], [0, 0, 1, 1], [], []>} : vector<144x128xbf16>, vector<128x128xbf16>, vector<144x128xf32> -> vector<144x128xf32>
    %13 = arith.addf %9, %12 : vector<144x128xf32>
    %c0_15 = arith.constant 0 : index
    %c0_16 = arith.constant 0 : index
    %14 = vector.load %arg8[%c0_15, %c0_16] : memref<144x128xf32, #tpu.memory_space<vmem>>, vector<144x128xf32>
    tpu.vector_store %arg8[%c0_15, %c0_16], %13 {strides = array<i32>} : memref<144x128xf32, #tpu.memory_space<vmem>>, vector<144x128xf32>,
    %c0_i32_17 = arith.constant 0 : i32
    %15 = arith.cmpi eq, %arg2, %c0_i32_17 : i32
    %16 = arith.extui %15 : i1 to i32
    %c0_i32_18 = arith.constant 0 : i32
    %17 = arith.cmpi ne, %16, %c0_i32_18 : i32
    scf.if %17 {
      %c0_19 = arith.constant 0 : index
      %c0_20 = arith.constant 0 : index
      %18 = vector.load %arg7[%c0_19, %c0_20] : memref<144x128xf32, #tpu.memory_space<vmem>>, vector<144x128xf32>
      %19 = arith.mulf %18, %18 : vector<144x128xf32>
      %c0_21 = arith.constant 0 : index
      %c0_22 = arith.constant 0 : index
      %20 = vector.load %arg8[%c0_21, %c0_22] : memref<144x128xf32, #tpu.memory_space<vmem>>, vector<144x128xf32>
      %21 = arith.mulf %20, %20 : vector<144x128xf32>
      %22 = arith.addf %19, %21 : vector<144x128xf32>
      %c0_23 = arith.constant 0 : index
      %c0_24 = arith.constant 0 : index
      %23 = vector.load %arg6[%c0_23, %c0_24] : memref<144x128xf32, #tpu.memory_space<vmem>>, vector<144x128xf32>
      tpu.vector_store %arg6[%c0_23, %c0_24], %22 {strides = array<i32>} : memref<144x128xf32, #tpu.memory_space<vmem>>, vector<144x128xf32>,
    } else {
    }
    return
  }
  func.func @transform_0(%arg0: i32, %arg1: i32, %arg2: i32) -> (i32, i32) {
    %c0_i32 = arith.constant 0 : i32
    return %arg0, %arg2 : i32, i32
  }
  func.func @transform_1(%arg0: i32, %arg1: i32, %arg2: i32) -> (i32, i32) {
    %c0_i32 = arith.constant 0 : i32
    return %arg2, %arg1 : i32, i32
  }
  func.func @transform_2(%arg0: i32, %arg1: i32, %arg2: i32) -> (i32, i32) {
    %c0_i32 = arith.constant 0 : i32
    return %arg2, %arg1 : i32, i32
  }
  func.func @transform_3(%arg0: i32, %arg1: i32, %arg2: i32) -> (i32, i32) {
    %c0_i32 = arith.constant 0 : i32
    return %arg0, %arg1 : i32, i32
  }
}

</mosaic_0001>

<llo_original>
// kernel: tpu_custom_call.1
$region0: #{tpu_custom_call.1}
  #allocation0 [shape = 'u32[]', space=smem, size = 0x4, offset = 0x4, fixed_abs, tag = 'smem constant byte address 0x4 - core index']
  #allocation1 [shape = 'u32[144,128]{1,0:T(1,128)}', space=vmem, size = 0x12000, scoped, tag = 'internal scratch']
  #allocation2 [shape = 'f32[144,128]{1,0:T(8,128)}', space=vmem, size = 0x12000, scoped, tag = 'scratch operand']
  #allocation3 [shape = 'f32[144,128]{1,0:T(8,128)}', space=vmem, size = 0x12000, scoped, tag = 'scratch operand']
  %s0 = inlined_call_operand.hbm [shape: bf16[144,128], index: 0, kind: input, shape index: {}]
  %s1 = inlined_call_operand.hbm [shape: bf16[128,128], index: 1, kind: input, shape index: {}]
  %s2 = inlined_call_operand.hbm [shape: bf16[128,128], index: 2, kind: input, shape index: {}]
  %s3 = inlined_call_operand.hbm [shape: f32[144,128], index: 3, kind: output, shape index: {}]
  %s4 = sld [smem:[#allocation0]]
  $region42: #{tpu_custom_call.1} parent=0
    _
  %s6 = ssub.s32 1, %s4
  %s7 = scalar_select 0, %s6, %s4
  $region1: #{tpu_custom_call.1} parent=0
    #allocation4 [shape = 'u8[36864]{0}', space=vmem, size = 0x9000, scoped, tag = 'input window, operand 0, single buffered']
    #allocation5 [shape = 's32[1]{0}', space=sflag, size = 0x4, scoped, tag = 'scoped memory for tpu_custom_call.1']
    #allocation6 [shape = 's32[1]{0}', space=sflag, size = 0x4, scoped, tag = 'scoped memory for tpu_custom_call.1']
    #allocation7 [shape = 'u8[32768]{0}', space=vmem, size = 0x8000, scoped, tag = 'input window, operand 1, single buffered']
    #allocation8 [shape = 's32[1]{0}', space=sflag, size = 0x4, scoped, tag = 'scoped memory for tpu_custom_call.1']
    #allocation9 [shape = 'u8[32768]{0}', space=vmem, size = 0x8000, scoped, tag = 'input window, operand 2, single buffered']
    #allocation10 [shape = 'u8[73728]{0}', space=vmem, size = 0x12000, scoped, tag = 'output window, operand 0, single buffered']
    %8 = vsyncpa [#allocation5], 0
    %9 = vsyncpa [#allocation8], 0
    %10 = vsyncpa [#allocation6], 0
    // Predicated region
    $region2: #{tpu_custom_call.1} parent=1 // pred_check
      _
    $region3: #{tpu_custom_call.1} parent=1 // pred_check_branch
      %12 = sbr.rel (0) target = $region5
    $region4: #{tpu_custom_call.1} parent=1 // pred_region
      %s14 = ssub.s32 1152, 1152
      %15 = vsyncadd [#allocation5], %s14
      %s16 = sshll.u32 [#allocation4], 4
      %s17 = int_to_ptr.vmem [resolvable:$true] %s16
      %22 = dma.hbm_to_vmem [thread:$0]  %s0, 1152, %s17, [#allocation5], 64, 64, 4
    $region5: #{tpu_custom_call.1} parent=1 // pred_fallthru
      _
    // Predicated region
    $region6: #{tpu_custom_call.1} parent=1 // pred_check
      _
    $region7: #{tpu_custom_call.1} parent=1 // pred_check_branch
      %24 = sbr.rel (0) target = $region9
    $region8: #{tpu_custom_call.1} parent=1 // pred_region
      %s26 = ssub.s32 1024, 1024
      %27 = vsyncadd [#allocation8], %s26
      %s28 = sshll.u32 [#allocation7], 4
      %s29 = int_to_ptr.vmem [resolvable:$true] %s28
      %34 = dma.hbm_to_vmem [thread:$0]  %s1, 1024, %s29, [#allocation8], 64, 64, 4
    $region9: #{tpu_custom_call.1} parent=1 // pred_fallthru
      _
    // Predicated region
    $region10: #{tpu_custom_call.1} parent=1 // pred_check
      _
    $region11: #{tpu_custom_call.1} parent=1 // pred_check_branch
      %36 = sbr.rel (0) target = $region13
    $region12: #{tpu_custom_call.1} parent=1 // pred_region
      %s38 = ssub.s32 1024, 1024
      %39 = vsyncadd [#allocation8], %s38
      %s40 = sshll.u32 [#allocation9], 4
      %s41 = int_to_ptr.vmem [resolvable:$true] %s40
      %46 = dma.hbm_to_vmem [thread:$0]  %s2, 1024, %s41, [#allocation8], 64, 64, 4
    $region13: #{tpu_custom_call.1} parent=1 // pred_fallthru
      _
    // Predicated region
    $region14: #{tpu_custom_call.1} parent=1 // pred_check
      _
    $region15: #{tpu_custom_call.1} parent=1 // pred_check_branch
      %48 = sbr.rel (0) target = $region17
    $region16: #{tpu_custom_call.1} parent=1 // pred_region
      %49 = dma.done [#allocation5], 1152
    $region17: #{tpu_custom_call.1} parent=1 // pred_fallthru
      _
    // Predicated region
    $region18: #{tpu_custom_call.1} parent=1 // pred_check
      _
    $region19: #{tpu_custom_call.1} parent=1 // pred_check_branch
      %51 = sbr.rel (0) target = $region21
    $region20: #{tpu_custom_call.1} parent=1 // pred_region
      %52 = dma.done [#allocation8], 1024
    $region21: #{tpu_custom_call.1} parent=1 // pred_fallthru
      _
    // Predicated region
    $region22: #{tpu_custom_call.1} parent=1 // pred_check
      _
    $region23: #{tpu_custom_call.1} parent=1 // pred_check_branch
      %54 = sbr.rel (0) target = $region25
    $region24: #{tpu_custom_call.1} parent=1 // pred_region
      %55 = dma.done [#allocation8], 1024
    $region25: #{tpu_custom_call.1} parent=1 // pred_fallthru
      _
    %p57 = scmp.eq.s32.totalorder 0, 0
    // Predicated region
    $region26: #{tpu_custom_call.1} parent=1 // pred_check
      %p58 = pneg %p57
    $region27: #{tpu_custom_call.1} parent=1 // pred_check_branch
      %60 = sbr.rel (%p58) target = $region29
    $region28: #{tpu_custom_call.1} parent=1 // pred_region
      %61 = vst [vmem:[#allocation2] sm:$0xff] 0.0
      %62 = vst [vmem:[#allocation2 + $0x8] sm:$0xff] 0.0
      %63 = vst [vmem:[#allocation2 + $0x10] sm:$0xff] 0.0
      %64 = vst [vmem:[#allocation2 + $0x18] sm:$0xff] 0.0
      %65 = vst [vmem:[#allocation2 + $0x20] sm:$0xff] 0.0
      %66 = vst [vmem:[#allocation2 + $0x28] sm:$0xff] 0.0
      %67 = vst [vmem:[#allocation2 + $0x30] sm:$0xff] 0.0
      %68 = vst [vmem:[#allocation2 + $0x38] sm:$0xff] 0.0
      %69 = vst [vmem:[#allocation2 + $0x40] sm:$0xff] 0.0
      %70 = vst [vmem:[#allocation2 + $0x48] sm:$0xff] 0.0
      %71 = vst [vmem:[#allocation2 + $0x50] sm:$0xff] 0.0
      %72 = vst [vmem:[#allocation2 + $0x58] sm:$0xff] 0.0
      %73 = vst [vmem:[#allocation2 + $0x60] sm:$0xff] 0.0
      %74 = vst [vmem:[#allocation2 + $0x68] sm:$0xff] 0.0
      %75 = vst [vmem:[#allocation2 + $0x70] sm:$0xff] 0.0
      %76 = vst [vmem:[#allocation2 + $0x78] sm:$0xff] 0.0
      %77 = vst [vmem:[#allocation2 + $0x80] sm:$0xff] 0.0
      %78 = vst [vmem:[#allocation2 + $0x88] sm:$0xff] 0.0
      %79 = vst [vmem:[#allocation3] sm:$0xff] 0.0
      %80 = vst [vmem:[#allocation3 + $0x8] sm:$0xff] 0.0
      %81 = vst [vmem:[#allocation3 + $0x10] sm:$0xff] 0.0
      %82 = vst [vmem:[#allocation3 + $0x18] sm:$0xff] 0.0
      %83 = vst [vmem:[#allocation3 + $0x20] sm:$0xff] 0.0
      %84 = vst [vmem:[#allocation3 + $0x28] sm:$0xff] 0.0
      %85 = vst [vmem:[#allocation3 + $0x30] sm:$0xff] 0.0
      %86 = vst [vmem:[#allocation3 + $0x38] sm:$0xff] 0.0
      %87 = vst [vmem:[#allocation3 + $0x40] sm:$0xff] 0.0
      %88 = vst [vmem:[#allocation3 + $0x48] sm:$0xff] 0.0
      %89 = vst [vmem:[#allocation3 + $0x50] sm:$0xff] 0.0
      %90 = vst [vmem:[#allocation3 + $0x58] sm:$0xff] 0.0
      %91 = vst [vmem:[#allocation3 + $0x60] sm:$0xff] 0.0
      %92 = vst [vmem:[#allocation3 + $0x68] sm:$0xff] 0.0
      %93 = vst [vmem:[#allocation3 + $0x70] sm:$0xff] 0.0
      %94 = vst [vmem:[#allocation3 + $0x78] sm:$0xff] 0.0
      %95 = vst [vmem:[#allocation3 + $0x80] sm:$0xff] 0.0
      %96 = vst [vmem:[#allocation3 + $0x88] sm:$0xff] 0.0
    $region29: #{tpu_custom_call.1} parent=1 // pred_fallthru
      _
    %v97 = vld [vmem:[#allocation2] sm:$0xff]
    %v98 = vld [vmem:[#allocation2 + $0x8] sm:$0xff]
    %v99 = vld [vmem:[#allocation2 + $0x10] sm:$0xff]
    %v100 = vld [vmem:[#allocation2 + $0x18] sm:$0xff]
    %v101 = vld [vmem:[#allocation2 + $0x20] sm:$0xff]
    %v102 = vld [vmem:[#allocation2 + $0x28] sm:$0xff]
    %v103 = vld [vmem:[#allocation2 + $0x30] sm:$0xff]
    %v104 = vld [vmem:[#allocation2 + $0x38] sm:$0xff]
    %v105 = vld [vmem:[#allocation2 + $0x40] sm:$0xff]
    %v106 = vld [vmem:[#allocation2 + $0x48] sm:$0xff]
    %v107 = vld [vmem:[#allocation2 + $0x50] sm:$0xff]
    %v108 = vld [vmem:[#allocation2 + $0x58] sm:$0xff]
    %v109 = vld [vmem:[#allocation2 + $0x60] sm:$0xff]
    %v110 = vld [vmem:[#allocation2 + $0x68] sm:$0xff]
    %v111 = vld [vmem:[#allocation2 + $0x70] sm:$0xff]
    %v112 = vld [vmem:[#allocation2 + $0x78] sm:$0xff]
    %v113 = vld [vmem:[#allocation2 + $0x80] sm:$0xff]
    %v114 = vld [vmem:[#allocation2 + $0x88] sm:$0xff]
    %v115 = vld [vmem:[#allocation4] sm:$0xf]
    %v116 = vld [vmem:[#allocation4 + $0x4] sm:$0xf]
    %v117 = vld [vmem:[#allocation4 + $0x8] sm:$0xf]
    %v118 = vld [vmem:[#allocation4 + $0xc] sm:$0xf]
    %v119 = vld [vmem:[#allocation4 + $0x10] sm:$0xf]
    %v120 = vld [vmem:[#allocation4 + $0x14] sm:$0xf]
    %v121 = vld [vmem:[#allocation4 + $0x18] sm:$0xf]
    %v122 = vld [vmem:[#allocation4 + $0x1c] sm:$0xf]
    %v123 = vld [vmem:[#allocation4 + $0x20] sm:$0xf]
    %v124 = vld [vmem:[#allocation4 + $0x24] sm:$0xf]
    %v125 = vld [vmem:[#allocation4 + $0x28] sm:$0xf]
    %v126 = vld [vmem:[#allocation4 + $0x2c] sm:$0xf]
    %v127 = vld [vmem:[#allocation4 + $0x30] sm:$0xf]
    %v128 = vld [vmem:[#allocation4 + $0x34] sm:$0xf]
    %v129 = vld [vmem:[#allocation4 + $0x38] sm:$0xf]
    %v130 = vld [vmem:[#allocation4 + $0x3c] sm:$0xf]
    %v131 = vld [vmem:[#allocation4 + $0x40] sm:$0xf]
    %v132 = vld [vmem:[#allocation4 + $0x44] sm:$0xf]
    %v133 = vld [vmem:[#allocation7] sm:$0xf]
    %v134 = vld [vmem:[#allocation7 + $0x4] sm:$0xf]
    %v135 = vld [vmem:[#allocation7 + $0x8] sm:$0xf]
    %v136 = vld [vmem:[#allocation7 + $0xc] sm:$0xf]
    %v137 = vld [vmem:[#allocation7 + $0x10] sm:$0xf]
    %v138 = vld [vmem:[#allocation7 + $0x14] sm:$0xf]
    %v139 = vld [vmem:[#allocation7 + $0x18] sm:$0xf]
    %v140 = vld [vmem:[#allocation7 + $0x1c] sm:$0xf]
    %v141 = vld [vmem:[#allocation7 + $0x20] sm:$0xf]
    %v142 = vld [vmem:[#allocation7 + $0x24] sm:$0xf]
    %v143 = vld [vmem:[#allocation7 + $0x28] sm:$0xf]
    %v144 = vld [vmem:[#allocation7 + $0x2c] sm:$0xf]
    %v145 = vld [vmem:[#allocation7 + $0x30] sm:$0xf]
    %v146 = vld [vmem:[#allocation7 + $0x34] sm:$0xf]
    %v147 = vld [vmem:[#allocation7 + $0x38] sm:$0xf]
    %v148 = vld [vmem:[#allocation7 + $0x3c] sm:$0xf]
    %v167 = vunpack.c.l.b16 %v115
    %v168 = vunpack.c.l.b16 %v116
    %v169 = vunpack.c.l.b16 %v117
    %v170 = vunpack.c.l.b16 %v118
    %v171 = vunpack.c.l.b16 %v119
    %v172 = vunpack.c.l.b16 %v120
    %v173 = vunpack.c.l.b16 %v121
    %v174 = vunpack.c.l.b16 %v122
    %v175 = vunpack.c.l.b16 %v123
    %v176 = vunpack.c.l.b16 %v124
    %v177 = vunpack.c.l.b16 %v125
    %v178 = vunpack.c.l.b16 %v126
    %v179 = vunpack.c.l.b16 %v127
    %v180 = vunpack.c.l.b16 %v128
    %v181 = vunpack.c.l.b16 %v129
    %v182 = vunpack.c.l.b16 %v130
    %v183 = vunpack.c.l.b16 %v131
    %v184 = vunpack.c.l.b16 %v132
    %v185 = vpack.c.b16 %v168, %v167
    %v186 = vpack.c.b16 %v170, %v169
    %v187 = vpack.c.b16 %v172, %v171
    %v188 = vpack.c.b16 %v174, %v173
    %v189 = vpack.c.b16 %v176, %v175
    %v190 = vpack.c.b16 %v178, %v177
    %v191 = vpack.c.b16 %v180, %v179
    %v192 = vpack.c.b16 %v182, %v181
    %v193 = vpack.c.b16 %v184, %v183
    %v219 = vunpack.c.l.b16 %v133
    %v220 = vunpack.c.l.b16 %v134
    %v221 = vunpack.c.l.b16 %v135
    %v222 = vunpack.c.l.b16 %v136
    %v223 = vunpack.c.l.b16 %v137
    %v224 = vunpack.c.l.b16 %v138
    %v225 = vunpack.c.l.b16 %v139
    %v226 = vunpack.c.l.b16 %v140
    %v227 = vunpack.c.l.b16 %v141
    %v228 = vunpack.c.l.b16 %v142
    %v229 = vunpack.c.l.b16 %v143
    %v230 = vunpack.c.l.b16 %v144
    %v231 = vunpack.c.l.b16 %v145
    %v232 = vunpack.c.l.b16 %v146
    %v233 = vunpack.c.l.b16 %v147
    %v234 = vunpack.c.l.b16 %v148
    %v235 = vpack.c.b16 %v220, %v219
    %v236 = vpack.c.b16 %v222, %v221
    %v237 = vpack.c.b16 %v224, %v223
    %v238 = vpack.c.b16 %v226, %v225
    %v239 = vpack.c.b16 %v228, %v227
    %v240 = vpack.c.b16 %v230, %v229
    %v241 = vpack.c.b16 %v232, %v231
    %v242 = vpack.c.b16 %v234, %v233
    %251 = vmatprep.subr.bf16.mxu0 0
    %252 = vmatpush1.bf16.msra.mxu0 %v235
    %253 = vmatprep.subr.bf16.mxu0 0
    %254 = vmatpush1.bf16.msra.mxu0 %v236
    %255 = vmatprep.subr.bf16.mxu0 0
    %256 = vmatpush1.bf16.msra.mxu0 %v237
    %257 = vmatprep.subr.bf16.mxu0 0
    %258 = vmatpush1.bf16.msra.mxu0 %v238
    %259 = vmatprep.subr.bf16.mxu0 0
    %260 = vmatpush1.bf16.msra.mxu0 %v239
    %261 = vmatprep.subr.bf16.mxu0 0
    %262 = vmatpush1.bf16.msra.mxu0 %v240
    %263 = vmatprep.subr.bf16.mxu0 0
    %264 = vmatpush1.bf16.msra.mxu0 %v241
    %265 = vmatprep.subr.bf16.mxu0 0
    %266 = vmatpush1.bf16.msra.mxu0 %v242
    %267 = vmatprep.subr.bf16.mxu0 0
    %268 = vmatpush1.bf16.msra.mxu0 0
    %269 = vmatprep.subr.bf16.mxu0 0
    %270 = vmatpush1.bf16.msra.mxu0 0
    %271 = vmatprep.subr.bf16.mxu0 0
    %272 = vmatpush1.bf16.msra.mxu0 0
    %273 = vmatprep.subr.bf16.mxu0 0
    %274 = vmatpush1.bf16.msra.mxu0 0
    %275 = vmatprep.subr.bf16.mxu0 0
    %276 = vmatpush1.bf16.msra.mxu0 0
    %277 = vmatprep.subr.bf16.mxu0 0
    %278 = vmatpush1.bf16.msra.mxu0 0
    %279 = vmatprep.subr.bf16.mxu0 0
    %280 = vmatpush1.bf16.msra.mxu0 0
    %281 = vmatprep.subr.bf16.mxu0 0
    %282 = vmatpush1.bf16.msra.mxu0 0
    %283 = vmatprep.mubr.bf16.mxu0 0
    %284 = vmatmul.mubr.bf16.gmra.mrb[0].mxu0 %v185
    %v285 = vpop.f32.mrb[0].mxu0
    %v286 = vadd.f32 0.0, %v285
    %v287 = vpop.f32.mrb[0].mxu0
    %v288 = vpop.f32.mrb[0].mxu0
    %v289 = vadd.f32 0.0, %v288
    %v290 = vpop.f32.mrb[0].mxu0
    %291 = vmatprep.mubr.bf16.mxu0 0
    %292 = vmatmul.mubr.bf16.gmra.mrb[0].mxu0 %v186
    %v293 = vpop.f32.mrb[0].mxu0
    %v294 = vadd.f32 0.0, %v293
    %v295 = vpop.f32.mrb[0].mxu0
    %v296 = vpop.f32.mrb[0].mxu0
    %v297 = vadd.f32 0.0, %v296
    %v298 = vpop.f32.mrb[0].mxu0
    %299 = vmatprep.mubr.bf16.mxu0 0
    %300 = vmatmul.mubr.bf16.gmra.mrb[0].mxu0 %v187
    %v301 = vpop.f32.mrb[0].mxu0
    %v302 = vadd.f32 0.0, %v301
    %v303 = vpop.f32.mrb[0].mxu0
    %v304 = vpop.f32.mrb[0].mxu0
    %v305 = vadd.f32 0.0, %v304
    %v306 = vpop.f32.mrb[0].mxu0
    %307 = vmatprep.mubr.bf16.mxu0 0
    %308 = vmatmul.mubr.bf16.gmra.mrb[0].mxu0 %v188
    %v309 = vpop.f32.mrb[0].mxu0
    %v310 = vadd.f32 0.0, %v309
    %v311 = vpop.f32.mrb[0].mxu0
    %v312 = vpop.f32.mrb[0].mxu0
    %v313 = vadd.f32 0.0, %v312
    %v314 = vpop.f32.mrb[0].mxu0
    %315 = vmatprep.mubr.bf16.mxu0 0
    %316 = vmatmul.mubr.bf16.gmra.mrb[0].mxu0 %v189
    %v317 = vpop.f32.mrb[0].mxu0
    %v318 = vadd.f32 0.0, %v317
    %v319 = vpop.f32.mrb[0].mxu0
    %v320 = vpop.f32.mrb[0].mxu0
    %v321 = vadd.f32 0.0, %v320
    %v322 = vpop.f32.mrb[0].mxu0
    %323 = vmatprep.mubr.bf16.mxu0 0
    %324 = vmatmul.mubr.bf16.gmra.mrb[0].mxu0 %v190
    %v325 = vpop.f32.mrb[0].mxu0
    %v326 = vadd.f32 0.0, %v325
    %v327 = vpop.f32.mrb[0].mxu0
    %v328 = vpop.f32.mrb[0].mxu0
    %v329 = vadd.f32 0.0, %v328
    %v330 = vpop.f32.mrb[0].mxu0
    %331 = vmatprep.mubr.bf16.mxu0 0
    %332 = vmatmul.mubr.bf16.gmra.mrb[0].mxu0 %v191
    %v333 = vpop.f32.mrb[0].mxu0
    %v334 = vadd.f32 0.0, %v333
    %v335 = vpop.f32.mrb[0].mxu0
    %v336 = vpop.f32.mrb[0].mxu0
    %v337 = vadd.f32 0.0, %v336
    %v338 = vpop.f32.mrb[0].mxu0
    %339 = vmatprep.mubr.bf16.mxu0 0
    %340 = vmatmul.mubr.bf16.gmra.mrb[0].mxu0 %v192
    %v341 = vpop.f32.mrb[0].mxu0
    %v342 = vadd.f32 0.0, %v341
    %v343 = vpop.f32.mrb[0].mxu0
    %v344 = vpop.f32.mrb[0].mxu0
    %v345 = vadd.f32 0.0, %v344
    %v346 = vpop.f32.mrb[0].mxu0
    %347 = vmatprep.mubr.bf16.mxu0 0
    %348 = vmatmul.mubr.bf16.gmra.mrb[0].mxu0 %v193
    %v349 = vpop.f32.mrb[0].mxu0
    %v350 = vadd.f32 0.0, %v349
    %v351 = vpop.f32.mrb[0].mxu0
    %v352 = vpop.f32.mrb[0].mxu0
    %v353 = vadd.f32 0.0, %v352
    %v354 = vpop.f32.mrb[0].mxu0
    %355 = vdwg.mxu0
    %v356 = vadd.f32 %v97, %v286
    %v357 = vadd.f32 %v98, %v289
    %v358 = vadd.f32 %v99, %v294
    %v359 = vadd.f32 %v100, %v297
    %v360 = vadd.f32 %v101, %v302
    %v361 = vadd.f32 %v102, %v305
    %v362 = vadd.f32 %v103, %v310
    %v363 = vadd.f32 %v104, %v313
    %v364 = vadd.f32 %v105, %v318
    %v365 = vadd.f32 %v106, %v321
    %v366 = vadd.f32 %v107, %v326
    %v367 = vadd.f32 %v108, %v329
    %v368 = vadd.f32 %v109, %v334
    %v369 = vadd.f32 %v110, %v337
    %v370 = vadd.f32 %v111, %v342
    %v371 = vadd.f32 %v112, %v345
    %v372 = vadd.f32 %v113, %v350
    %v373 = vadd.f32 %v114, %v353
    %374 = vst [vmem:[#allocation2] sm:$0xff] %v356
    %375 = vst [vmem:[#allocation2 + $0x8] sm:$0xff] %v357
    %376 = vst [vmem:[#allocation2 + $0x10] sm:$0xff] %v358
    %377 = vst [vmem:[#allocation2 + $0x18] sm:$0xff] %v359
    %378 = vst [vmem:[#allocation2 + $0x20] sm:$0xff] %v360
    %379 = vst [vmem:[#allocation2 + $0x28] sm:$0xff] %v361
    %380 = vst [vmem:[#allocation2 + $0x30] sm:$0xff] %v362
    %381 = vst [vmem:[#allocation2 + $0x38] sm:$0xff] %v363
    %382 = vst [vmem:[#allocation2 + $0x40] sm:$0xff] %v364
    %383 = vst [vmem:[#allocation2 + $0x48] sm:$0xff] %v365
    %384 = vst [vmem:[#allocation2 + $0x50] sm:$0xff] %v366
    %385 = vst [vmem:[#allocation2 + $0x58] sm:$0xff] %v367
    %386 = vst [vmem:[#allocation2 + $0x60] sm:$0xff] %v368
    %387 = vst [vmem:[#allocation2 + $0x68] sm:$0xff] %v369
    %388 = vst [vmem:[#allocation2 + $0x70] sm:$0xff] %v370
    %389 = vst [vmem:[#allocation2 + $0x78] sm:$0xff] %v371
    %390 = vst [vmem:[#allocation2 + $0x80] sm:$0xff] %v372
    %391 = vst [vmem:[#allocation2 + $0x88] sm:$0xff] %v373
    %v392 = vld [vmem:[#allocation3] sm:$0xff]
    %v393 = vld [vmem:[#allocation3 + $0x8] sm:$0xff]
    %v394 = vld [vmem:[#allocation3 + $0x10] sm:$0xff]
    %v395 = vld [vmem:[#allocation3 + $0x18] sm:$0xff]
    %v396 = vld [vmem:[#allocation3 + $0x20] sm:$0xff]
    %v397 = vld [vmem:[#allocation3 + $0x28] sm:$0xff]
    %v398 = vld [vmem:[#allocation3 + $0x30] sm:$0xff]
    %v399 = vld [vmem:[#allocation3 + $0x38] sm:$0xff]
    %v400 = vld [vmem:[#allocation3 + $0x40] sm:$0xff]
    %v401 = vld [vmem:[#allocation3 + $0x48] sm:$0xff]
    %v402 = vld [vmem:[#allocation3 + $0x50] sm:$0xff]
    %v403 = vld [vmem:[#allocation3 + $0x58] sm:$0xff]
    %v404 = vld [vmem:[#allocation3 + $0x60] sm:$0xff]
    %v405 = vld [vmem:[#allocation3 + $0x68] sm:$0xff]
    %v406 = vld [vmem:[#allocation3 + $0x70] sm:$0xff]
    %v407 = vld [vmem:[#allocation3 + $0x78] sm:$0xff]
    %v408 = vld [vmem:[#allocation3 + $0x80] sm:$0xff]
    %v409 = vld [vmem:[#allocation3 + $0x88] sm:$0xff]
    %v410 = vld [vmem:[#allocation4] sm:$0xf]
    %v411 = vld [vmem:[#allocation4 + $0x4] sm:$0xf]
    %v412 = vld [vmem:[#allocation4 + $0x8] sm:$0xf]
    %v413 = vld [vmem:[#allocation4 + $0xc] sm:$0xf]
    %v414 = vld [vmem:[#allocation4 + $0x10] sm:$0xf]
    %v415 = vld [vmem:[#allocation4 + $0x14] sm:$0xf]
    %v416 = vld [vmem:[#allocation4 + $0x18] sm:$0xf]
    %v417 = vld [vmem:[#allocation4 + $0x1c] sm:$0xf]
    %v418 = vld [vmem:[#allocation4 + $0x20] sm:$0xf]
    %v419 = vld [vmem:[#allocation4 + $0x24] sm:$0xf]
    %v420 = vld [vmem:[#allocation4 + $0x28] sm:$0xf]
    %v421 = vld [vmem:[#allocation4 + $0x2c] sm:$0xf]
    %v422 = vld [vmem:[#allocation4 + $0x30] sm:$0xf]
    %v423 = vld [vmem:[#allocation4 + $0x34] sm:$0xf]
    %v424 = vld [vmem:[#allocation4 + $0x38] sm:$0xf]
    %v425 = vld [vmem:[#allocation4 + $0x3c] sm:$0xf]
    %v426 = vld [vmem:[#allocation4 + $0x40] sm:$0xf]
    %v427 = vld [vmem:[#allocation4 + $0x44] sm:$0xf]
    %v428 = vld [vmem:[#allocation9] sm:$0xf]
    %v429 = vld [vmem:[#allocation9 + $0x4] sm:$0xf]
    %v430 = vld [vmem:[#allocation9 + $0x8] sm:$0xf]
    %v431 = vld [vmem:[#allocation9 + $0xc] sm:$0xf]
    %v432 = vld [vmem:[#allocation9 + $0x10] sm:$0xf]
    %v433 = vld [vmem:[#allocation9 + $0x14] sm:$0xf]
    %v434 = vld [vmem:[#allocation9 + $0x18] sm:$0xf]
    %v435 = vld [vmem:[#allocation9 + $0x1c] sm:$0xf]
    %v436 = vld [vmem:[#allocation9 + $0x20] sm:$0xf]
    %v437 = vld [vmem:[#allocation9 + $0x24] sm:$0xf]
    %v438 = vld [vmem:[#allocation9 + $0x28] sm:$0xf]
    %v439 = vld [vmem:[#allocation9 + $0x2c] sm:$0xf]
    %v440 = vld [vmem:[#allocation9 + $0x30] sm:$0xf]
    %v441 = vld [vmem:[#allocation9 + $0x34] sm:$0xf]
    %v442 = vld [vmem:[#allocation9 + $0x38] sm:$0xf]
    %v443 = vld [vmem:[#allocation9 + $0x3c] sm:$0xf]
    %v462 = vunpack.c.l.b16 %v410
    %v463 = vunpack.c.l.b16 %v411
    %v464 = vunpack.c.l.b16 %v412
    %v465 = vunpack.c.l.b16 %v413
    %v466 = vunpack.c.l.b16 %v414
    %v467 = vunpack.c.l.b16 %v415
    %v468 = vunpack.c.l.b16 %v416
    %v469 = vunpack.c.l.b16 %v417
    %v470 = vunpack.c.l.b16 %v418
    %v471 = vunpack.c.l.b16 %v419
    %v472 = vunpack.c.l.b16 %v420
    %v473 = vunpack.c.l.b16 %v421
    %v474 = vunpack.c.l.b16 %v422
    %v475 = vunpack.c.l.b16 %v423
    %v476 = vunpack.c.l.b16 %v424
    %v477 = vunpack.c.l.b16 %v425
    %v478 = vunpack.c.l.b16 %v426
    %v479 = vunpack.c.l.b16 %v427
    %v480 = vpack.c.b16 %v463, %v462
    %v481 = vpack.c.b16 %v465, %v464
    %v482 = vpack.c.b16 %v467, %v466
    %v483 = vpack.c.b16 %v469, %v468
    %v484 = vpack.c.b16 %v471, %v470
    %v485 = vpack.c.b16 %v473, %v472
    %v486 = vpack.c.b16 %v475, %v474
    %v487 = vpack.c.b16 %v477, %v476
    %v488 = vpack.c.b16 %v479, %v478
    %v514 = vunpack.c.l.b16 %v428
    %v515 = vunpack.c.l.b16 %v429
    %v516 = vunpack.c.l.b16 %v430
    %v517 = vunpack.c.l.b16 %v431
    %v518 = vunpack.c.l.b16 %v432
    %v519 = vunpack.c.l.b16 %v433
    %v520 = vunpack.c.l.b16 %v434
    %v521 = vunpack.c.l.b16 %v435
    %v522 = vunpack.c.l.b16 %v436
    %v523 = vunpack.c.l.b16 %v437
    %v524 = vunpack.c.l.b16 %v438
    %v525 = vunpack.c.l.b16 %v439
    %v526 = vunpack.c.l.b16 %v440
    %v527 = vunpack.c.l.b16 %v441
    %v528 = vunpack.c.l.b16 %v442
    %v529 = vunpack.c.l.b16 %v443
    %v530 = vpack.c.b16 %v515, %v514
    %v531 = vpack.c.b16 %v517, %v516
    %v532 = vpack.c.b16 %v519, %v518
    %v533 = vpack.c.b16 %v521, %v520
    %v534 = vpack.c.b16 %v523, %v522
    %v535 = vpack.c.b16 %v525, %v524
    %v536 = vpack.c.b16 %v527, %v526
    %v537 = vpack.c.b16 %v529, %v528
    %546 = vmatprep.subr.bf16.mxu0 0
    %547 = vmatpush1.bf16.msra.mxu0 %v530
    %548 = vmatprep.subr.bf16.mxu0 0
    %549 = vmatpush1.bf16.msra.mxu0 %v531
    %550 = vmatprep.subr.bf16.mxu0 0
    %551 = vmatpush1.bf16.msra.mxu0 %v532
    %552 = vmatprep.subr.bf16.mxu0 0
    %553 = vmatpush1.bf16.msra.mxu0 %v533
    %554 = vmatprep.subr.bf16.mxu0 0
    %555 = vmatpush1.bf16.msra.mxu0 %v534
    %556 = vmatprep.subr.bf16.mxu0 0
    %557 = vmatpush1.bf16.msra.mxu0 %v535
    %558 = vmatprep.subr.bf16.mxu0 0
    %559 = vmatpush1.bf16.msra.mxu0 %v536
    %560 = vmatprep.subr.bf16.mxu0 0
    %561 = vmatpush1.bf16.msra.mxu0 %v537
    %562 = vmatprep.subr.bf16.mxu0 0
    %563 = vmatpush1.bf16.msra.mxu0 0
    %564 = vmatprep.subr.bf16.mxu0 0
    %565 = vmatpush1.bf16.msra.mxu0 0
    %566 = vmatprep.subr.bf16.mxu0 0
    %567 = vmatpush1.bf16.msra.mxu0 0
    %568 = vmatprep.subr.bf16.mxu0 0
    %569 = vmatpush1.bf16.msra.mxu0 0
    %570 = vmatprep.subr.bf16.mxu0 0
    %571 = vmatpush1.bf16.msra.mxu0 0
    %572 = vmatprep.subr.bf16.mxu0 0
    %573 = vmatpush1.bf16.msra.mxu0 0
    %574 = vmatprep.subr.bf16.mxu0 0
    %575 = vmatpush1.bf16.msra.mxu0 0
    %576 = vmatprep.subr.bf16.mxu0 0
    %577 = vmatpush1.bf16.msra.mxu0 0
    %578 = vmatprep.mubr.bf16.mxu0 0
    %579 = vmatmul.mubr.bf16.gmra.mrb[0].mxu0 %v480
    %v580 = vpop.f32.mrb[0].mxu0
    %v581 = vadd.f32 0.0, %v580
    %v582 = vpop.f32.mrb[0].mxu0
    %v583 = vpop.f32.mrb[0].mxu0
    %v584 = vadd.f32 0.0, %v583
    %v585 = vpop.f32.mrb[0].mxu0
    %586 = vmatprep.mubr.bf16.mxu0 0
    %587 = vmatmul.mubr.bf16.gmra.mrb[0].mxu0 %v481
    %v588 = vpop.f32.mrb[0].mxu0
    %v589 = vadd.f32 0.0, %v588
    %v590 = vpop.f32.mrb[0].mxu0
    %v591 = vpop.f32.mrb[0].mxu0
    %v592 = vadd.f32 0.0, %v591
    %v593 = vpop.f32.mrb[0].mxu0
    %594 = vmatprep.mubr.bf16.mxu0 0
    %595 = vmatmul.mubr.bf16.gmra.mrb[0].mxu0 %v482
    %v596 = vpop.f32.mrb[0].mxu0
    %v597 = vadd.f32 0.0, %v596
    %v598 = vpop.f32.mrb[0].mxu0
    %v599 = vpop.f32.mrb[0].mxu0
    %v600 = vadd.f32 0.0, %v599
    %v601 = vpop.f32.mrb[0].mxu0
    %602 = vmatprep.mubr.bf16.mxu0 0
    %603 = vmatmul.mubr.bf16.gmra.mrb[0].mxu0 %v483
    %v604 = vpop.f32.mrb[0].mxu0
    %v605 = vadd.f32 0.0, %v604
    %v606 = vpop.f32.mrb[0].mxu0
    %v607 = vpop.f32.mrb[0].mxu0
    %v608 = vadd.f32 0.0, %v607
    %v609 = vpop.f32.mrb[0].mxu0
    %610 = vmatprep.mubr.bf16.mxu0 0
    %611 = vmatmul.mubr.bf16.gmra.mrb[0].mxu0 %v484
    %v612 = vpop.f32.mrb[0].mxu0
    %v613 = vadd.f32 0.0, %v612
    %v614 = vpop.f32.mrb[0].mxu0
    %v615 = vpop.f32.mrb[0].mxu0
    %v616 = vadd.f32 0.0, %v615
    %v617 = vpop.f32.mrb[0].mxu0
    %618 = vmatprep.mubr.bf16.mxu0 0
    %619 = vmatmul.mubr.bf16.gmra.mrb[0].mxu0 %v485
    %v620 = vpop.f32.mrb[0].mxu0
    %v621 = vadd.f32 0.0, %v620
    %v622 = vpop.f32.mrb[0].mxu0
    %v623 = vpop.f32.mrb[0].mxu0
    %v624 = vadd.f32 0.0, %v623
    %v625 = vpop.f32.mrb[0].mxu0
    %626 = vmatprep.mubr.bf16.mxu0 0
    %627 = vmatmul.mubr.bf16.gmra.mrb[0].mxu0 %v486
    %v628 = vpop.f32.mrb[0].mxu0
    %v629 = vadd.f32 0.0, %v628
    %v630 = vpop.f32.mrb[0].mxu0
    %v631 = vpop.f32.mrb[0].mxu0
    %v632 = vadd.f32 0.0, %v631
    %v633 = vpop.f32.mrb[0].mxu0
    %634 = vmatprep.mubr.bf16.mxu0 0
    %635 = vmatmul.mubr.bf16.gmra.mrb[0].mxu0 %v487
    %v636 = vpop.f32.mrb[0].mxu0
    %v637 = vadd.f32 0.0, %v636
    %v638 = vpop.f32.mrb[0].mxu0
    %v639 = vpop.f32.mrb[0].mxu0
    %v640 = vadd.f32 0.0, %v639
    %v641 = vpop.f32.mrb[0].mxu0
    %642 = vmatprep.mubr.bf16.mxu0 0
    %643 = vmatmul.mubr.bf16.gmra.mrb[0].mxu0 %v488
    %v644 = vpop.f32.mrb[0].mxu0
    %v645 = vadd.f32 0.0, %v644
    %v646 = vpop.f32.mrb[0].mxu0
    %v647 = vpop.f32.mrb[0].mxu0
    %v648 = vadd.f32 0.0, %v647
    %v649 = vpop.f32.mrb[0].mxu0
    %650 = vdwg.mxu0
    %v651 = vadd.f32 %v392, %v581
    %v652 = vadd.f32 %v393, %v584
    %v653 = vadd.f32 %v394, %v589
    %v654 = vadd.f32 %v395, %v592
    %v655 = vadd.f32 %v396, %v597
    %v656 = vadd.f32 %v397, %v600
    %v657 = vadd.f32 %v398, %v605
    %v658 = vadd.f32 %v399, %v608
    %v659 = vadd.f32 %v400, %v613
    %v660 = vadd.f32 %v401, %v616
    %v661 = vadd.f32 %v402, %v621
    %v662 = vadd.f32 %v403, %v624
    %v663 = vadd.f32 %v404, %v629
    %v664 = vadd.f32 %v405, %v632
    %v665 = vadd.f32 %v406, %v637
    %v666 = vadd.f32 %v407, %v640
    %v667 = vadd.f32 %v408, %v645
    %v668 = vadd.f32 %v409, %v648
    %669 = vst [vmem:[#allocation3] sm:$0xff] %v651
    %670 = vst [vmem:[#allocation3 + $0x8] sm:$0xff] %v652
    %671 = vst [vmem:[#allocation3 + $0x10] sm:$0xff] %v653
    %672 = vst [vmem:[#allocation3 + $0x18] sm:$0xff] %v654
    %673 = vst [vmem:[#allocation3 + $0x20] sm:$0xff] %v655
    %674 = vst [vmem:[#allocation3 + $0x28] sm:$0xff] %v656
    %675 = vst [vmem:[#allocation3 + $0x30] sm:$0xff] %v657
    %676 = vst [vmem:[#allocation3 + $0x38] sm:$0xff] %v658
    %677 = vst [vmem:[#allocation3 + $0x40] sm:$0xff] %v659
    %678 = vst [vmem:[#allocation3 + $0x48] sm:$0xff] %v660
    %679 = vst [vmem:[#allocation3 + $0x50] sm:$0xff] %v661
    %680 = vst [vmem:[#allocation3 + $0x58] sm:$0xff] %v662
    %681 = vst [vmem:[#allocation3 + $0x60] sm:$0xff] %v663
    %682 = vst [vmem:[#allocation3 + $0x68] sm:$0xff] %v664
    %683 = vst [vmem:[#allocation3 + $0x70] sm:$0xff] %v665
    %684 = vst [vmem:[#allocation3 + $0x78] sm:$0xff] %v666
    %685 = vst [vmem:[#allocation3 + $0x80] sm:$0xff] %v667
    %686 = vst [vmem:[#allocation3 + $0x88] sm:$0xff] %v668
    // Predicated region
    $region30: #{tpu_custom_call.1} parent=1 // pred_check
      %p687 = pneg %p57
    $region31: #{tpu_custom_call.1} parent=1 // pred_check_branch
      %689 = sbr.rel (%p687) target = $region33
    $region32: #{tpu_custom_call.1} parent=1 // pred_region
      %v690 = vld [vmem:[#allocation2] sm:$0xff]
      %v691 = vld [vmem:[#allocation2 + $0x8] sm:$0xff]
      %v692 = vld [vmem:[#allocation2 + $0x10] sm:$0xff]
      %v693 = vld [vmem:[#allocation2 + $0x18] sm:$0xff]
      %v694 = vld [vmem:[#allocation2 + $0x20] sm:$0xff]
      %v695 = vld [vmem:[#allocation2 + $0x28] sm:$0xff]
      %v696 = vld [vmem:[#allocation2 + $0x30] sm:$0xff]
      %v697 = vld [vmem:[#allocation2 + $0x38] sm:$0xff]
      %v698 = vld [vmem:[#allocation2 + $0x40] sm:$0xff]
      %v699 = vld [vmem:[#allocation2 + $0x48] sm:$0xff]
      %v700 = vld [vmem:[#allocation2 + $0x50] sm:$0xff]
      %v701 = vld [vmem:[#allocation2 + $0x58] sm:$0xff]
      %v702 = vld [vmem:[#allocation2 + $0x60] sm:$0xff]
      %v703 = vld [vmem:[#allocation2 + $0x68] sm:$0xff]
      %v704 = vld [vmem:[#allocation2 + $0x70] sm:$0xff]
      %v705 = vld [vmem:[#allocation2 + $0x78] sm:$0xff]
      %v706 = vld [vmem:[#allocation2 + $0x80] sm:$0xff]
      %v707 = vld [vmem:[#allocation2 + $0x88] sm:$0xff]
      %v708 = vmul.f32 %v690, %v690
      %v709 = vmul.f32 %v691, %v691
      %v710 = vmul.f32 %v692, %v692
      %v711 = vmul.f32 %v693, %v693
      %v712 = vmul.f32 %v694, %v694
      %v713 = vmul.f32 %v695, %v695
      %v714 = vmul.f32 %v696, %v696
      %v715 = vmul.f32 %v697, %v697
      %v716 = vmul.f32 %v698, %v698
      %v717 = vmul.f32 %v699, %v699
      %v718 = vmul.f32 %v700, %v700
      %v719 = vmul.f32 %v701, %v701
      %v720 = vmul.f32 %v702, %v702
      %v721 = vmul.f32 %v703, %v703
      %v722 = vmul.f32 %v704, %v704
      %v723 = vmul.f32 %v705, %v705
      %v724 = vmul.f32 %v706, %v706
      %v725 = vmul.f32 %v707, %v707
      %v726 = vld [vmem:[#allocation3] sm:$0xff]
      %v727 = vld [vmem:[#allocation3 + $0x8] sm:$0xff]
      %v728 = vld [vmem:[#allocation3 + $0x10] sm:$0xff]
      %v729 = vld [vmem:[#allocation3 + $0x18] sm:$0xff]
      %v730 = vld [vmem:[#allocation3 + $0x20] sm:$0xff]
      %v731 = vld [vmem:[#allocation3 + $0x28] sm:$0xff]
      %v732 = vld [vmem:[#allocation3 + $0x30] sm:$0xff]
      %v733 = vld [vmem:[#allocation3 + $0x38] sm:$0xff]
      %v734 = vld [vmem:[#allocation3 + $0x40] sm:$0xff]
      %v735 = vld [vmem:[#allocation3 + $0x48] sm:$0xff]
      %v736 = vld [vmem:[#allocation3 + $0x50] sm:$0xff]
      %v737 = vld [vmem:[#allocation3 + $0x58] sm:$0xff]
      %v738 = vld [vmem:[#allocation3 + $0x60] sm:$0xff]
      %v739 = vld [vmem:[#allocation3 + $0x68] sm:$0xff]
      %v740 = vld [vmem:[#allocation3 + $0x70] sm:$0xff]
      %v741 = vld [vmem:[#allocation3 + $0x78] sm:$0xff]
      %v742 = vld [vmem:[#allocation3 + $0x80] sm:$0xff]
      %v743 = vld [vmem:[#allocation3 + $0x88] sm:$0xff]
      %v744 = vmul.f32 %v726, %v726
      %v745 = vmul.f32 %v727, %v727
      %v746 = vmul.f32 %v728, %v728
      %v747 = vmul.f32 %v729, %v729
      %v748 = vmul.f32 %v730, %v730
      %v749 = vmul.f32 %v731, %v731
      %v750 = vmul.f32 %v732, %v732
      %v751 = vmul.f32 %v733, %v733
      %v752 = vmul.f32 %v734, %v734
      %v753 = vmul.f32 %v735, %v735
      %v754 = vmul.f32 %v736, %v736
      %v755 = vmul.f32 %v737, %v737
      %v756 = vmul.f32 %v738, %v738
      %v757 = vmul.f32 %v739, %v739
      %v758 = vmul.f32 %v740, %v740
      %v759 = vmul.f32 %v741, %v741
      %v760 = vmul.f32 %v742, %v742
      %v761 = vmul.f32 %v743, %v743
      %v762 = vadd.f32 %v708, %v744
      %v763 = vadd.f32 %v709, %v745
      %v764 = vadd.f32 %v710, %v746
      %v765 = vadd.f32 %v711, %v747
      %v766 = vadd.f32 %v712, %v748
      %v767 = vadd.f32 %v713, %v749
      %v768 = vadd.f32 %v714, %v750
      %v769 = vadd.f32 %v715, %v751
      %v770 = vadd.f32 %v716, %v752
      %v771 = vadd.f32 %v717, %v753
      %v772 = vadd.f32 %v718, %v754
      %v773 = vadd.f32 %v719, %v755
      %v774 = vadd.f32 %v720, %v756
      %v775 = vadd.f32 %v721, %v757
      %v776 = vadd.f32 %v722, %v758
      %v777 = vadd.f32 %v723, %v759
      %v778 = vadd.f32 %v724, %v760
      %v779 = vadd.f32 %v725, %v761
      %780 = vst [vmem:[#allocation10] sm:$0xff] %v762
      %781 = vst [vmem:[#allocation10 + $0x8] sm:$0xff] %v763
      %782 = vst [vmem:[#allocation10 + $0x10] sm:$0xff] %v764
      %783 = vst [vmem:[#allocation10 + $0x18] sm:$0xff] %v765
      %784 = vst [vmem:[#allocation10 + $0x20] sm:$0xff] %v766
      %785 = vst [vmem:[#allocation10 + $0x28] sm:$0xff] %v767
      %786 = vst [vmem:[#allocation10 + $0x30] sm:$0xff] %v768
      %787 = vst [vmem:[#allocation10 + $0x38] sm:$0xff] %v769
      %788 = vst [vmem:[#allocation10 + $0x40] sm:$0xff] %v770
      %789 = vst [vmem:[#allocation10 + $0x48] sm:$0xff] %v771
      %790 = vst [vmem:[#allocation10 + $0x50] sm:$0xff] %v772
      %791 = vst [vmem:[#allocation10 + $0x58] sm:$0xff] %v773
      %792 = vst [vmem:[#allocation10 + $0x60] sm:$0xff] %v774
      %793 = vst [vmem:[#allocation10 + $0x68] sm:$0xff] %v775
      %794 = vst [vmem:[#allocation10 + $0x70] sm:$0xff] %v776
      %795 = vst [vmem:[#allocation10 + $0x78] sm:$0xff] %v777
      %796 = vst [vmem:[#allocation10 + $0x80] sm:$0xff] %v778
      %797 = vst [vmem:[#allocation10 + $0x88] sm:$0xff] %v779
    $region33: #{tpu_custom_call.1} parent=1 // pred_fallthru
      _
    // Predicated region
    $region34: #{tpu_custom_call.1} parent=1 // pred_check
      _
    $region35: #{tpu_custom_call.1} parent=1 // pred_check_branch
      %799 = sbr.rel (0) target = $region37
    $region36: #{tpu_custom_call.1} parent=1 // pred_region
      %s801 = ssub.s32 2304, 2304
      %802 = vsyncadd [#allocation6], %s801
      %s803 = sshll.u32 [#allocation10], 4
      %s804 = int_to_ptr.vmem [resolvable:$true] %s803
      %809 = dma.vmem_to_hbm [thread:$0]  %s804, 2304, %s3, [#allocation6], 128, 128, 8
    $region37: #{tpu_custom_call.1} parent=1 // pred_fallthru
      _
    // Predicated region
    $region38: #{tpu_custom_call.1} parent=1 // pred_check
      _
    $region39: #{tpu_custom_call.1} parent=1 // pred_check_branch
      %811 = sbr.rel (0) target = $region41
    $region40: #{tpu_custom_call.1} parent=1 // pred_region
      %812 = dma.done [#allocation6], 2304
    $region41: #{tpu_custom_call.1} parent=1 // pred_fallthru
      _
    %813 = vsyncpa [#allocation5], 1
    %814 = vsyncpa [#allocation8], 1
    %815 = vsyncpa [#allocation6], 1

</llo_original>
